<compile_context>
chip_gen: v5e
topology: v5e:2x2
jax: 0.10.0
libtpu: 0.0.40
codegen_flags: <defaults>
</compile_context>

<pallas_src>
import functools

import jax
import jax.numpy as jnp
from jax import lax
from jax.experimental import pallas as pl
from jax.experimental.pallas import tpu as pltpu


def _rnn_fc_kernel(num_layers, seq_len, batch, hidden, *refs):
    """Multi-layer Elman RNN (tanh) + final Linear on the last timestep.

    refs = (xw0_ref,                      # (S, B, H) layer-0 input proj (+bias)
            whh0_ref,                     # (H, H)
            wih_1, whh_1, b_1, ..., wih_{L-1}, whh_{L-1}, b_{L-1},
            wfc_ref, bfc_ref,             # (H, C), (1, C)
            out_ref,                      # (B, C)
            seq_scratch)                  # (S, B, H), only if num_layers > 1
    All weight matrices are pre-transposed to (in_features, out_features);
    biases are pre-combined (b_ih + b_hh).
    """
    xw0_ref = refs[0]
    whh0_ref = refs[1]
    upper_refs = refs[2:2 + 3 * (num_layers - 1)]
    wfc_ref = refs[2 + 3 * (num_layers - 1)]
    bfc_ref = refs[3 + 3 * (num_layers - 1)]
    out_ref = refs[4 + 3 * (num_layers - 1)]
    seq = refs[5 + 3 * (num_layers - 1)] if num_layers > 1 else None

    h0 = jnp.zeros((batch, hidden), jnp.float32)

    # ---------------- layer 0 ----------------
    # Input projection (x_t @ Wih0 + b0) was precomputed in XLA glue, so the
    # serial critical path has a single MXU push (h @ Whh) per timestep.
    whh0 = whh0_ref[...]
    store_l0 = num_layers > 1

    def step0(t, h):
        h_new = jnp.tanh(
            xw0_ref[t]
            + jnp.dot(h, whh0, preferred_element_type=jnp.float32))
        if store_l0:
            seq[t] = h_new               # only needed to feed the next layer
        return h_new

    h = lax.fori_loop(0, seq_len, step0, h0, unroll=True)

    # ---------------- layers 1 .. L-1 ----------------
    for l in range(1, num_layers):
        wih = upper_refs[3 * (l - 1)][...]          # (H, H)
        whh = upper_refs[3 * (l - 1) + 1][...]      # (H, H)
        b = upper_refs[3 * (l - 1) + 2][...]        # (1, H)

        # Hoisted input projection: one (S*B, H) @ (H, H) matmul + bias,
        # written back into the scratch so the loop just reads seq[t].
        prev = seq[...].reshape(seq_len * batch, hidden)
        xw = jnp.dot(prev, wih, preferred_element_type=jnp.float32) + b
        seq[...] = xw.reshape(seq_len, batch, hidden)

        store = l < num_layers - 1                  # last layer: carry h only

        def step(t, h, whh=whh, store=store):
            h_new = jnp.tanh(
                seq[t]
                + jnp.dot(h, whh, preferred_element_type=jnp.float32))
            if store:
                seq[t] = h_new
            return h_new

        h = lax.fori_loop(0, seq_len, step, h0, unroll=True)
        # TODO(synk): nn.RNN inter-layer dropout (training-mode only) omitted;
        # this kernel implements eval/inference semantics.

    # ---------------- fused FC on out[:, -1, :] ----------------
    out_ref[...] = (jnp.dot(h, wfc_ref[...], preferred_element_type=jnp.float32)
                    + bfc_ref[...])


def rnn_model_forward(token_ids, emb_table, layer_params, wfc_t, bfc):
    """token_ids: (B, S) int32.  Returns logits (B, num_classes) float32."""
    B, S = token_ids.shape
    H = layer_params[0][1].shape[0]
    C = wfc_t.shape[1]
    num_layers = len(layer_params)

    # --- glue: fold layer-0 input projection into the embedding table, then
    #     gather and transpose to time-major.  (50, E) @ (E, H) once in XLA
    #     replaces every per-step layer-0 input matmul inside the kernel.
    wih0_t, whh0_t, b0 = layer_params[0]
    proj_table = (jnp.dot(emb_table.astype(jnp.float32), wih0_t)
                  + b0.reshape(1, H))                       # (V, H)
    xw0 = jnp.take(proj_table, token_ids, axis=0)            # (B, S, H)
    xw0_sbh = jnp.transpose(xw0, (1, 0, 2))                  # (S, B, H)

    flat_params = [whh0_t]
    for (wih_t, whh_t, b) in layer_params[1:]:
        flat_params += [wih_t, whh_t, b.reshape(1, H)]

    kernel = functools.partial(_rnn_fc_kernel, num_layers, S, B, H)

    n_inputs = 2 + 3 * (num_layers - 1) + 2
    scratch_shapes = ([pltpu.VMEM((S, B, H), jnp.float32)]
                      if num_layers > 1 else [])

    # Gridless single program: at these sizes everything (weights + scratch)
    # is tiny and VMEM-resident on v5e/v6e/v7x.  If B/H grow, add a parallel
    # batch grid axis (v7x megacore) and stream Whh per layer via pl.ANY DMA.
    out = pl.pallas_call(
        kernel,
        out_shape=jax.ShapeDtypeStruct((B, C), jnp.float32),
        in_specs=[pl.BlockSpec(memory_space=pltpu.MemorySpace.VMEM)] * n_inputs,
        out_specs=pl.BlockSpec(memory_space=pltpu.MemorySpace.VMEM),
        scratch_shapes=scratch_shapes,
    )(xw0_sbh, *flat_params, wfc_t, bfc.reshape(1, C))
    return out


def init_params(key, n_vocab, embed, hidden, num_layers, num_classes):
    """Deterministic synthetic parameters (PyTorch-style uniform init)."""
    keys = jax.random.split(key, 2 + 4 * num_layers + 2)
    k_iter = iter(keys)

    emb_table = jax.random.normal(next(k_iter), (n_vocab, embed), jnp.float32)
    emb_table = emb_table.at[n_vocab - 1].set(0.0)       # padding_idx row

    bound = 1.0 / jnp.sqrt(hidden)
    layer_params = []
    for l in range(num_layers):
        in_dim = embed if l == 0 else hidden
        w_ih = jax.random.uniform(next(k_iter), (hidden, in_dim), jnp.float32,
                                  -bound, bound)
        w_hh = jax.random.uniform(next(k_iter), (hidden, hidden), jnp.float32,
                                  -bound, bound)
        b_ih = jax.random.uniform(next(k_iter), (hidden,), jnp.float32,
                                  -bound, bound)
        b_hh = jax.random.uniform(next(k_iter), (hidden,), jnp.float32,
                                  -bound, bound)
        # pre-transpose to (in, out) and combine biases for the kernel
        layer_params.append((w_ih.T, w_hh.T, b_ih + b_hh))

    fc_bound = 1.0 / jnp.sqrt(hidden)
    w_fc = jax.random.uniform(next(k_iter), (num_classes, hidden), jnp.float32,
                              -fc_bound, fc_bound)
    b_fc = jax.random.uniform(next(k_iter), (num_classes,), jnp.float32,
                              -fc_bound, fc_bound)
    return emb_table, layer_params, w_fc.T, b_fc


if __name__ == "__main__":
    # config: n_vocab=50, embed=32, hidden_size=32, num_layers=2,
    #         num_classes=5, dropout=0.5 (inactive at inference)
    N_VOCAB, EMBED, HIDDEN, NUM_LAYERS, NUM_CLASSES = 50, 32, 32, 2, 5
    BATCH, SEQ = 4, 8

    key = jax.random.PRNGKey(0)
    k_ids, k_params = jax.random.split(key)

    token_ids = jax.random.randint(k_ids, (BATCH, SEQ), 0, N_VOCAB, jnp.int32)
    seq_lens = jnp.full((BATCH,), SEQ, jnp.int32)
    # TODO(synk): seq_lens is unused — fixed-length semantics, matching
    # nn.RNN(batch_first=True) + out[:, -1, :] without packed sequences.
    x = (token_ids, seq_lens)                # forward() uses x[0]

    emb_table, layer_params, wfc_t, bfc = init_params(
        k_params, N_VOCAB, EMBED, HIDDEN, NUM_LAYERS, NUM_CLASSES)

    logits = rnn_model_forward(x[0], emb_table, layer_params, wfc_t, bfc)
    jax.block_until_ready(logits)
    assert logits.shape == (BATCH, NUM_CLASSES)
    print("KERNEL_OK")
</pallas_src>

<mosaic_0001>
module attributes {stable_mosaic.version = 11 : i64} {
  func.func @_rnn_fc_kernel(%arg0: memref<8x4x32xf32, #tpu.memory_space<vmem>>, %arg1: memref<32x32xf32, #tpu.memory_space<vmem>>, %arg2: memref<32x32xf32, #tpu.memory_space<vmem>>, %arg3: memref<32x32xf32, #tpu.memory_space<vmem>>, %arg4: memref<1x32xf32, #tpu.memory_space<vmem>>, %arg5: memref<32x5xf32, #tpu.memory_space<vmem>>, %arg6: memref<1x5xf32, #tpu.memory_space<vmem>>, %arg7: memref<4x5xf32, #tpu.memory_space<vmem>>, %arg8: memref<8x4x32xf32, #tpu.memory_space<vmem>>) attributes {dimension_semantics = [], scalar_prefetch = 0 : i64, scratch_operands = 1 : i64, tpu.core_type = #tpu.core_type<tc>} {
    %cst = arith.constant 0.000000e+00 : f32
    %0 = vector.broadcast %cst : f32 to vector<4x32xf32>
    %c0 = arith.constant 0 : index
    %c0_0 = arith.constant 0 : index
    %1 = vector.load %arg1[%c0, %c0_0] : memref<32x32xf32, #tpu.memory_space<vmem>>, vector<32x32xf32>
    %c0_i32 = arith.constant 0 : i32
    %2 = arith.index_cast %c0_i32 : i32 to index
    %c0_1 = arith.constant 0 : index
    %c0_2 = arith.constant 0 : index
    %3 = vector.load %arg0[%2, %c0_1, %c0_2] : memref<8x4x32xf32, #tpu.memory_space<vmem>>, vector<1x4x32xf32>
    %4 = vector.shape_cast %3 : vector<1x4x32xf32> to vector<4x32xf32>
    %cst_3 = arith.constant dense<0.000000e+00> : vector<4x32xf32>
    %5 = tpu.matmul %0, %1, %cst_3 {dimension_numbers = #tpu.dot_dimension_numbers<[1], [0], [0], [1], [0, 0, 1, 1], [], []>} : vector<4x32xf32>, vector<32x32xf32>, vector<4x32xf32> -> vector<4x32xf32>
    %6 = arith.addf %4, %5 : vector<4x32xf32>
    %7 = math.tanh %6 : vector<4x32xf32>
    %8 = arith.index_cast %c0_i32 : i32 to index
    %c0_4 = arith.constant 0 : index
    %c0_5 = arith.constant 0 : index
    %9 = vector.load %arg8[%8, %c0_4, %c0_5] : memref<8x4x32xf32, #tpu.memory_space<vmem>>, vector<1x4x32xf32>
    %10 = vector.shape_cast %9 : vector<1x4x32xf32> to vector<4x32xf32>
    %11 = vector.shape_cast %7 : vector<4x32xf32> to vector<1x4x32xf32>
    tpu.vector_store %arg8[%8, %c0_4, %c0_5], %11 {strides = array<i32>} : memref<8x4x32xf32, #tpu.memory_space<vmem>>, vector<1x4x32xf32>,
    %c1_i32 = arith.constant 1 : i32
    %12 = arith.index_cast %c1_i32 : i32 to index
    %c0_6 = arith.constant 0 : index
    %c0_7 = arith.constant 0 : index
    %13 = vector.load %arg0[%12, %c0_6, %c0_7] : memref<8x4x32xf32, #tpu.memory_space<vmem>>, vector<1x4x32xf32>
    %14 = vector.shape_cast %13 : vector<1x4x32xf32> to vector<4x32xf32>
    %cst_8 = arith.constant dense<0.000000e+00> : vector<4x32xf32>
    %15 = tpu.matmul %7, %1, %cst_8 {dimension_numbers = #tpu.dot_dimension_numbers<[1], [0], [0], [1], [0, 0, 1, 1], [], []>} : vector<4x32xf32>, vector<32x32xf32>, vector<4x32xf32> -> vector<4x32xf32>
    %16 = arith.addf %14, %15 : vector<4x32xf32>
    %17 = math.tanh %16 : vector<4x32xf32>
    %18 = arith.index_cast %c1_i32 : i32 to index
    %c0_9 = arith.constant 0 : index
    %c0_10 = arith.constant 0 : index
    %19 = vector.load %arg8[%18, %c0_9, %c0_10] : memref<8x4x32xf32, #tpu.memory_space<vmem>>, vector<1x4x32xf32>
    %20 = vector.shape_cast %19 : vector<1x4x32xf32> to vector<4x32xf32>
    %21 = vector.shape_cast %17 : vector<4x32xf32> to vector<1x4x32xf32>
    tpu.vector_store %arg8[%18, %c0_9, %c0_10], %21 {strides = array<i32>} : memref<8x4x32xf32, #tpu.memory_space<vmem>>, vector<1x4x32xf32>,
    %c2_i32 = arith.constant 2 : i32
    %22 = arith.index_cast %c2_i32 : i32 to index
    %c0_11 = arith.constant 0 : index
    %c0_12 = arith.constant 0 : index
    %23 = vector.load %arg0[%22, %c0_11, %c0_12] : memref<8x4x32xf32, #tpu.memory_space<vmem>>, vector<1x4x32xf32>
    %24 = vector.shape_cast %23 : vector<1x4x32xf32> to vector<4x32xf32>
    %cst_13 = arith.constant dense<0.000000e+00> : vector<4x32xf32>
    %25 = tpu.matmul %17, %1, %cst_13 {dimension_numbers = #tpu.dot_dimension_numbers<[1], [0], [0], [1], [0, 0, 1, 1], [], []>} : vector<4x32xf32>, vector<32x32xf32>, vector<4x32xf32> -> vector<4x32xf32>
    %26 = arith.addf %24, %25 : vector<4x32xf32>
    %27 = math.tanh %26 : vector<4x32xf32>
    %28 = arith.index_cast %c2_i32 : i32 to index
    %c0_14 = arith.constant 0 : index
    %c0_15 = arith.constant 0 : index
    %29 = vector.load %arg8[%28, %c0_14, %c0_15] : memref<8x4x32xf32, #tpu.memory_space<vmem>>, vector<1x4x32xf32>
    %30 = vector.shape_cast %29 : vector<1x4x32xf32> to vector<4x32xf32>
    %31 = vector.shape_cast %27 : vector<4x32xf32> to vector<1x4x32xf32>
    tpu.vector_store %arg8[%28, %c0_14, %c0_15], %31 {strides = array<i32>} : memref<8x4x32xf32, #tpu.memory_space<vmem>>, vector<1x4x32xf32>,
    %c3_i32 = arith.constant 3 : i32
    %32 = arith.index_cast %c3_i32 : i32 to index
    %c0_16 = arith.constant 0 : index
    %c0_17 = arith.constant 0 : index
    %33 = vector.load %arg0[%32, %c0_16, %c0_17] : memref<8x4x32xf32, #tpu.memory_space<vmem>>, vector<1x4x32xf32>
    %34 = vector.shape_cast %33 : vector<1x4x32xf32> to vector<4x32xf32>
    %cst_18 = arith.constant dense<0.000000e+00> : vector<4x32xf32>
    %35 = tpu.matmul %27, %1, %cst_18 {dimension_numbers = #tpu.dot_dimension_numbers<[1], [0], [0], [1], [0, 0, 1, 1], [], []>} : vector<4x32xf32>, vector<32x32xf32>, vector<4x32xf32> -> vector<4x32xf32>
    %36 = arith.addf %34, %35 : vector<4x32xf32>
    %37 = math.tanh %36 : vector<4x32xf32>
    %38 = arith.index_cast %c3_i32 : i32 to index
    %c0_19 = arith.constant 0 : index
    %c0_20 = arith.constant 0 : index
    %39 = vector.load %arg8[%38, %c0_19, %c0_20] : memref<8x4x32xf32, #tpu.memory_space<vmem>>, vector<1x4x32xf32>
    %40 = vector.shape_cast %39 : vector<1x4x32xf32> to vector<4x32xf32>
    %41 = vector.shape_cast %37 : vector<4x32xf32> to vector<1x4x32xf32>
    tpu.vector_store %arg8[%38, %c0_19, %c0_20], %41 {strides = array<i32>} : memref<8x4x32xf32, #tpu.memory_space<vmem>>, vector<1x4x32xf32>,
    %c4_i32 = arith.constant 4 : i32
    %42 = arith.index_cast %c4_i32 : i32 to index
    %c0_21 = arith.constant 0 : index
    %c0_22 = arith.constant 0 : index
    %43 = vector.load %arg0[%42, %c0_21, %c0_22] : memref<8x4x32xf32, #tpu.memory_space<vmem>>, vector<1x4x32xf32>
    %44 = vector.shape_cast %43 : vector<1x4x32xf32> to vector<4x32xf32>
    %cst_23 = arith.constant dense<0.000000e+00> : vector<4x32xf32>
    %45 = tpu.matmul %37, %1, %cst_23 {dimension_numbers = #tpu.dot_dimension_numbers<[1], [0], [0], [1], [0, 0, 1, 1], [], []>} : vector<4x32xf32>, vector<32x32xf32>, vector<4x32xf32> -> vector<4x32xf32>
    %46 = arith.addf %44, %45 : vector<4x32xf32>
    %47 = math.tanh %46 : vector<4x32xf32>
    %48 = arith.index_cast %c4_i32 : i32 to index
    %c0_24 = arith.constant 0 : index
    %c0_25 = arith.constant 0 : index
    %49 = vector.load %arg8[%48, %c0_24, %c0_25] : memref<8x4x32xf32, #tpu.memory_space<vmem>>, vector<1x4x32xf32>
    %50 = vector.shape_cast %49 : vector<1x4x32xf32> to vector<4x32xf32>
    %51 = vector.shape_cast %47 : vector<4x32xf32> to vector<1x4x32xf32>
    tpu.vector_store %arg8[%48, %c0_24, %c0_25], %51 {strides = array<i32>} : memref<8x4x32xf32, #tpu.memory_space<vmem>>, vector<1x4x32xf32>,
    %c5_i32 = arith.constant 5 : i32
    %52 = arith.index_cast %c5_i32 : i32 to index
    %c0_26 = arith.constant 0 : index
    %c0_27 = arith.constant 0 : index
    %53 = vector.load %arg0[%52, %c0_26, %c0_27] : memref<8x4x32xf32, #tpu.memory_space<vmem>>, vector<1x4x32xf32>
    %54 = vector.shape_cast %53 : vector<1x4x32xf32> to vector<4x32xf32>
    %cst_28 = arith.constant dense<0.000000e+00> : vector<4x32xf32>
    %55 = tpu.matmul %47, %1, %cst_28 {dimension_numbers = #tpu.dot_dimension_numbers<[1], [0], [0], [1], [0, 0, 1, 1], [], []>} : vector<4x32xf32>, vector<32x32xf32>, vector<4x32xf32> -> vector<4x32xf32>
    %56 = arith.addf %54, %55 : vector<4x32xf32>
    %57 = math.tanh %56 : vector<4x32xf32>
    %58 = arith.index_cast %c5_i32 : i32 to index
    %c0_29 = arith.constant 0 : index
    %c0_30 = arith.constant 0 : index
    %59 = vector.load %arg8[%58, %c0_29, %c0_30] : memref<8x4x32xf32, #tpu.memory_space<vmem>>, vector<1x4x32xf32>
    %60 = vector.shape_cast %59 : vector<1x4x32xf32> to vector<4x32xf32>
    %61 = vector.shape_cast %57 : vector<4x32xf32> to vector<1x4x32xf32>
    tpu.vector_store %arg8[%58, %c0_29, %c0_30], %61 {strides = array<i32>} : memref<8x4x32xf32, #tpu.memory_space<vmem>>, vector<1x4x32xf32>,
    %c6_i32 = arith.constant 6 : i32
    %62 = arith.index_cast %c6_i32 : i32 to index
    %c0_31 = arith.constant 0 : index
    %c0_32 = arith.constant 0 : index
    %63 = vector.load %arg0[%62, %c0_31, %c0_32] : memref<8x4x32xf32, #tpu.memory_space<vmem>>, vector<1x4x32xf32>
    %64 = vector.shape_cast %63 : vector<1x4x32xf32> to vector<4x32xf32>
    %cst_33 = arith.constant dense<0.000000e+00> : vector<4x32xf32>
    %65 = tpu.matmul %57, %1, %cst_33 {dimension_numbers = #tpu.dot_dimension_numbers<[1], [0], [0], [1], [0, 0, 1, 1], [], []>} : vector<4x32xf32>, vector<32x32xf32>, vector<4x32xf32> -> vector<4x32xf32>
    %66 = arith.addf %64, %65 : vector<4x32xf32>
    %67 = math.tanh %66 : vector<4x32xf32>
    %68 = arith.index_cast %c6_i32 : i32 to index
    %c0_34 = arith.constant 0 : index
    %c0_35 = arith.constant 0 : index
    %69 = vector.load %arg8[%68, %c0_34, %c0_35] : memref<8x4x32xf32, #tpu.memory_space<vmem>>, vector<1x4x32xf32>
    %70 = vector.shape_cast %69 : vector<1x4x32xf32> to vector<4x32xf32>
    %71 = vector.shape_cast %67 : vector<4x32xf32> to vector<1x4x32xf32>
    tpu.vector_store %arg8[%68, %c0_34, %c0_35], %71 {strides = array<i32>} : memref<8x4x32xf32, #tpu.memory_space<vmem>>, vector<1x4x32xf32>,
    %c7_i32 = arith.constant 7 : i32
    %72 = arith.index_cast %c7_i32 : i32 to index
    %c0_36 = arith.constant 0 : index
    %c0_37 = arith.constant 0 : index
    %73 = vector.load %arg0[%72, %c0_36, %c0_37] : memref<8x4x32xf32, #tpu.memory_space<vmem>>, vector<1x4x32xf32>
    %74 = vector.shape_cast %73 : vector<1x4x32xf32> to vector<4x32xf32>
    %cst_38 = arith.constant dense<0.000000e+00> : vector<4x32xf32>
    %75 = tpu.matmul %67, %1, %cst_38 {dimension_numbers = #tpu.dot_dimension_numbers<[1], [0], [0], [1], [0, 0, 1, 1], [], []>} : vector<4x32xf32>, vector<32x32xf32>, vector<4x32xf32> -> vector<4x32xf32>
    %76 = arith.addf %74, %75 : vector<4x32xf32>
    %77 = math.tanh %76 : vector<4x32xf32>
    %78 = arith.index_cast %c7_i32 : i32 to index
    %c0_39 = arith.constant 0 : index
    %c0_40 = arith.constant 0 : index
    %79 = vector.load %arg8[%78, %c0_39, %c0_40] : memref<8x4x32xf32, #tpu.memory_space<vmem>>, vector<1x4x32xf32>
    %80 = vector.shape_cast %79 : vector<1x4x32xf32> to vector<4x32xf32>
    %81 = vector.shape_cast %77 : vector<4x32xf32> to vector<1x4x32xf32>
    tpu.vector_store %arg8[%78, %c0_39, %c0_40], %81 {strides = array<i32>} : memref<8x4x32xf32, #tpu.memory_space<vmem>>, vector<1x4x32xf32>,
    %c8_i32 = arith.constant 8 : i32
    %c0_41 = arith.constant 0 : index
    %c0_42 = arith.constant 0 : index
    %82 = vector.load %arg2[%c0_41, %c0_42] : memref<32x32xf32, #tpu.memory_space<vmem>>, vector<32x32xf32>
    %c0_43 = arith.constant 0 : index
    %c0_44 = arith.constant 0 : index
    %83 = vector.load %arg3[%c0_43, %c0_44] : memref<32x32xf32, #tpu.memory_space<vmem>>, vector<32x32xf32>
    %c0_45 = arith.constant 0 : index
    %c0_46 = arith.constant 0 : index
    %84 = vector.load %arg4[%c0_45, %c0_46] : memref<1x32xf32, #tpu.memory_space<vmem>>, vector<1x32xf32>
    %c0_47 = arith.constant 0 : index
    %c0_48 = arith.constant 0 : index
    %c0_49 = arith.constant 0 : index
    %85 = vector.load %arg8[%c0_47, %c0_48, %c0_49] : memref<8x4x32xf32, #tpu.memory_space<vmem>>, vector<8x4x32xf32>
    %86 = vector.shape_cast %85 : vector<8x4x32xf32> to vector<32x32xf32>
    %cst_50 = arith.constant dense<0.000000e+00> : vector<32x32xf32>
    %87 = tpu.matmul %86, %82, %cst_50 {dimension_numbers = #tpu.dot_dimension_numbers<[1], [0], [0], [1], [0, 0, 1, 1], [], []>} : vector<32x32xf32>, vector<32x32xf32>, vector<32x32xf32> -> vector<32x32xf32>
    %88 = vector.broadcast %84 : vector<1x32xf32> to vector<32x32xf32>
    %89 = arith.addf %87, %88 : vector<32x32xf32>
    %90 = vector.shape_cast %89 : vector<32x32xf32> to vector<8x4x32xf32>
    %c0_51 = arith.constant 0 : index
    %c0_52 = arith.constant 0 : index
    %c0_53 = arith.constant 0 : index
    %91 = vector.load %arg8[%c0_51, %c0_52, %c0_53] : memref<8x4x32xf32, #tpu.memory_space<vmem>>, vector<8x4x32xf32>
    tpu.vector_store %arg8[%c0_51, %c0_52, %c0_53], %90 {strides = array<i32>} : memref<8x4x32xf32, #tpu.memory_space<vmem>>, vector<8x4x32xf32>,
    %c0_i32_54 = arith.constant 0 : i32
    %92 = arith.index_cast %c0_i32_54 : i32 to index
    %c0_55 = arith.constant 0 : index
    %c0_56 = arith.constant 0 : index
    %93 = vector.load %arg8[%92, %c0_55, %c0_56] : memref<8x4x32xf32, #tpu.memory_space<vmem>>, vector<1x4x32xf32>
    %94 = vector.shape_cast %93 : vector<1x4x32xf32> to vector<4x32xf32>
    %cst_57 = arith.constant dense<0.000000e+00> : vector<4x32xf32>
    %95 = tpu.matmul %0, %83, %cst_57 {dimension_numbers = #tpu.dot_dimension_numbers<[1], [0], [0], [1], [0, 0, 1, 1], [], []>} : vector<4x32xf32>, vector<32x32xf32>, vector<4x32xf32> -> vector<4x32xf32>
    %96 = arith.addf %94, %95 : vector<4x32xf32>
    %97 = math.tanh %96 : vector<4x32xf32>
    %c1_i32_58 = arith.constant 1 : i32
    %98 = arith.index_cast %c1_i32_58 : i32 to index
    %c0_59 = arith.constant 0 : index
    %c0_60 = arith.constant 0 : index
    %99 = vector.load %arg8[%98, %c0_59, %c0_60] : memref<8x4x32xf32, #tpu.memory_space<vmem>>, vector<1x4x32xf32>
    %100 = vector.shape_cast %99 : vector<1x4x32xf32> to vector<4x32xf32>
    %cst_61 = arith.constant dense<0.000000e+00> : vector<4x32xf32>
    %101 = tpu.matmul %97, %83, %cst_61 {dimension_numbers = #tpu.dot_dimension_numbers<[1], [0], [0], [1], [0, 0, 1, 1], [], []>} : vector<4x32xf32>, vector<32x32xf32>, vector<4x32xf32> -> vector<4x32xf32>
    %102 = arith.addf %100, %101 : vector<4x32xf32>
    %103 = math.tanh %102 : vector<4x32xf32>
    %c2_i32_62 = arith.constant 2 : i32
    %104 = arith.index_cast %c2_i32_62 : i32 to index
    %c0_63 = arith.constant 0 : index
    %c0_64 = arith.constant 0 : index
    %105 = vector.load %arg8[%104, %c0_63, %c0_64] : memref<8x4x32xf32, #tpu.memory_space<vmem>>, vector<1x4x32xf32>
    %106 = vector.shape_cast %105 : vector<1x4x32xf32> to vector<4x32xf32>
    %cst_65 = arith.constant dense<0.000000e+00> : vector<4x32xf32>
    %107 = tpu.matmul %103, %83, %cst_65 {dimension_numbers = #tpu.dot_dimension_numbers<[1], [0], [0], [1], [0, 0, 1, 1], [], []>} : vector<4x32xf32>, vector<32x32xf32>, vector<4x32xf32> -> vector<4x32xf32>
    %108 = arith.addf %106, %107 : vector<4x32xf32>
    %109 = math.tanh %108 : vector<4x32xf32>
    %c3_i32_66 = arith.constant 3 : i32
    %110 = arith.index_cast %c3_i32_66 : i32 to index
    %c0_67 = arith.constant 0 : index
    %c0_68 = arith.constant 0 : index
    %111 = vector.load %arg8[%110, %c0_67, %c0_68] : memref<8x4x32xf32, #tpu.memory_space<vmem>>, vector<1x4x32xf32>
    %112 = vector.shape_cast %111 : vector<1x4x32xf32> to vector<4x32xf32>
    %cst_69 = arith.constant dense<0.000000e+00> : vector<4x32xf32>
    %113 = tpu.matmul %109, %83, %cst_69 {dimension_numbers = #tpu.dot_dimension_numbers<[1], [0], [0], [1], [0, 0, 1, 1], [], []>} : vector<4x32xf32>, vector<32x32xf32>, vector<4x32xf32> -> vector<4x32xf32>
    %114 = arith.addf %112, %113 : vector<4x32xf32>
    %115 = math.tanh %114 : vector<4x32xf32>
    %c4_i32_70 = arith.constant 4 : i32
    %116 = arith.index_cast %c4_i32_70 : i32 to index
    %c0_71 = arith.constant 0 : index
    %c0_72 = arith.constant 0 : index
    %117 = vector.load %arg8[%116, %c0_71, %c0_72] : memref<8x4x32xf32, #tpu.memory_space<vmem>>, vector<1x4x32xf32>
    %118 = vector.shape_cast %117 : vector<1x4x32xf32> to vector<4x32xf32>
    %cst_73 = arith.constant dense<0.000000e+00> : vector<4x32xf32>
    %119 = tpu.matmul %115, %83, %cst_73 {dimension_numbers = #tpu.dot_dimension_numbers<[1], [0], [0], [1], [0, 0, 1, 1], [], []>} : vector<4x32xf32>, vector<32x32xf32>, vector<4x32xf32> -> vector<4x32xf32>
    %120 = arith.addf %118, %119 : vector<4x32xf32>
    %121 = math.tanh %120 : vector<4x32xf32>
    %c5_i32_74 = arith.constant 5 : i32
    %122 = arith.index_cast %c5_i32_74 : i32 to index
    %c0_75 = arith.constant 0 : index
    %c0_76 = arith.constant 0 : index
    %123 = vector.load %arg8[%122, %c0_75, %c0_76] : memref<8x4x32xf32, #tpu.memory_space<vmem>>, vector<1x4x32xf32>
    %124 = vector.shape_cast %123 : vector<1x4x32xf32> to vector<4x32xf32>
    %cst_77 = arith.constant dense<0.000000e+00> : vector<4x32xf32>
    %125 = tpu.matmul %121, %83, %cst_77 {dimension_numbers = #tpu.dot_dimension_numbers<[1], [0], [0], [1], [0, 0, 1, 1], [], []>} : vector<4x32xf32>, vector<32x32xf32>, vector<4x32xf32> -> vector<4x32xf32>
    %126 = arith.addf %124, %125 : vector<4x32xf32>
    %127 = math.tanh %126 : vector<4x32xf32>
    %c6_i32_78 = arith.constant 6 : i32
    %128 = arith.index_cast %c6_i32_78 : i32 to index
    %c0_79 = arith.constant 0 : index
    %c0_80 = arith.constant 0 : index
    %129 = vector.load %arg8[%128, %c0_79, %c0_80] : memref<8x4x32xf32, #tpu.memory_space<vmem>>, vector<1x4x32xf32>
    %130 = vector.shape_cast %129 : vector<1x4x32xf32> to vector<4x32xf32>
    %cst_81 = arith.constant dense<0.000000e+00> : vector<4x32xf32>
    %131 = tpu.matmul %127, %83, %cst_81 {dimension_numbers = #tpu.dot_dimension_numbers<[1], [0], [0], [1], [0, 0, 1, 1], [], []>} : vector<4x32xf32>, vector<32x32xf32>, vector<4x32xf32> -> vector<4x32xf32>
    %132 = arith.addf %130, %131 : vector<4x32xf32>
    %133 = math.tanh %132 : vector<4x32xf32>
    %c7_i32_82 = arith.constant 7 : i32
    %134 = arith.index_cast %c7_i32_82 : i32 to index
    %c0_83 = arith.constant 0 : index
    %c0_84 = arith.constant 0 : index
    %135 = vector.load %arg8[%134, %c0_83, %c0_84] : memref<8x4x32xf32, #tpu.memory_space<vmem>>, vector<1x4x32xf32>
    %136 = vector.shape_cast %135 : vector<1x4x32xf32> to vector<4x32xf32>
    %cst_85 = arith.constant dense<0.000000e+00> : vector<4x32xf32>
    %137 = tpu.matmul %133, %83, %cst_85 {dimension_numbers = #tpu.dot_dimension_numbers<[1], [0], [0], [1], [0, 0, 1, 1], [], []>} : vector<4x32xf32>, vector<32x32xf32>, vector<4x32xf32> -> vector<4x32xf32>
    %138 = arith.addf %136, %137 : vector<4x32xf32>
    %139 = math.tanh %138 : vector<4x32xf32>
    %c8_i32_86 = arith.constant 8 : i32
    %c0_87 = arith.constant 0 : index
    %c0_88 = arith.constant 0 : index
    %140 = vector.load %arg5[%c0_87, %c0_88] : memref<32x5xf32, #tpu.memory_space<vmem>>, vector<32x5xf32>
    %cst_89 = arith.constant dense<0.000000e+00> : vector<4x5xf32>
    %141 = tpu.matmul %139, %140, %cst_89 {dimension_numbers = #tpu.dot_dimension_numbers<[1], [0], [0], [1], [0, 0, 1, 1], [], []>} : vector<4x32xf32>, vector<32x5xf32>, vector<4x5xf32> -> vector<4x5xf32>
    %c0_90 = arith.constant 0 : index
    %c0_91 = arith.constant 0 : index
    %142 = vector.load %arg6[%c0_90, %c0_91] : memref<1x5xf32, #tpu.memory_space<vmem>>, vector<1x5xf32>
    %143 = vector.broadcast %142 : vector<1x5xf32> to vector<4x5xf32>
    %144 = arith.addf %141, %143 : vector<4x5xf32>
    %c0_92 = arith.constant 0 : index
    %c0_93 = arith.constant 0 : index
    %145 = vector.load %arg7[%c0_92, %c0_93] : memref<4x5xf32, #tpu.memory_space<vmem>>, vector<4x5xf32>
    tpu.vector_store %arg7[%c0_92, %c0_93], %144 {strides = array<i32>} : memref<4x5xf32, #tpu.memory_space<vmem>>, vector<4x5xf32>,
    return
  }
}

</mosaic_0001>

<llo_original>
// kernel: tpu_custom_call.1
$region0: #{tpu_custom_call.1}
  #allocation0 [shape = 'u32[]', space=smem, size = 0x4, offset = 0x4, fixed_abs, tag = 'smem constant byte address 0x4 - core index']
  #allocation1 [shape = 'u32[72,128]{1,0:T(1,128)}', space=vmem, size = 0x9000, scoped, tag = 'internal scratch']
  #allocation2 [shape = 'f32[8,4,32]{2,1,0:T(4,128)}', space=vmem, size = 0x4000, scoped, tag = 'scratch operand']
  %s0 = inlined_call_operand.vmem [shape: f32[8,4,32], index: 0, kind: input, shape index: {}]
  %s1 = inlined_call_operand.hbm [shape: f32[32,32], index: 1, kind: input, shape index: {}]
  %s2 = inlined_call_operand.hbm [shape: f32[32,32], index: 2, kind: input, shape index: {}]
  %s3 = inlined_call_operand.hbm [shape: f32[32,32], index: 3, kind: input, shape index: {}]
  %s4 = inlined_call_operand.vmem [shape: f32[1,32], index: 4, kind: input, shape index: {}]
  %s5 = inlined_call_operand.vmem [shape: f32[32,5], index: 5, kind: input, shape index: {}]
  %s6 = inlined_call_operand.vmem [shape: f32[1,5], index: 6, kind: input, shape index: {}]
  %s7 = inlined_call_operand.hbm [shape: f32[4,5], index: 7, kind: output, shape index: {}]
  %s8 = sld [smem:[#allocation0]]
  $region50: #{tpu_custom_call.1} parent=0
    _
  %s10 = ssub.s32 1, %s8
  %s11 = scalar_select 0, %s10, %s8
  $region1: #{tpu_custom_call.1} parent=0
    #allocation3 [shape = 'u8[16384]{0}', space=vmem, size = 0x4000, scoped, tag = 'input window, operand 1, single buffered']
    #allocation4 [shape = 's32[1]{0}', space=sflag, size = 0x4, scoped, tag = 'scoped memory for tpu_custom_call.1']
    #allocation5 [shape = 's32[1]{0}', space=sflag, size = 0x4, scoped, tag = 'scoped memory for tpu_custom_call.1']
    #allocation6 [shape = 'u8[16384]{0}', space=vmem, size = 0x4000, scoped, tag = 'input window, operand 2, single buffered']
    #allocation7 [shape = 's32[1]{0}', space=sflag, size = 0x4, scoped, tag = 'scoped memory for tpu_custom_call.1']
    #allocation8 [shape = 'u8[16384]{0}', space=vmem, size = 0x4000, scoped, tag = 'input window, operand 3, single buffered']
    #allocation9 [shape = 'u8[2048]{0}', space=vmem, size = 0x800, scoped, tag = 'output window, operand 0, single buffered']
    %12 = vsyncpa [#allocation4], 0
    %13 = vsyncpa [#allocation7], 0
    %14 = vsyncpa [#allocation5], 0
    // Predicated region
    $region2: #{tpu_custom_call.1} parent=1 // pred_check
      _
    $region3: #{tpu_custom_call.1} parent=1 // pred_check_branch
      %16 = sbr.rel (0) target = $region5
    $region4: #{tpu_custom_call.1} parent=1 // pred_region
      _
    $region5: #{tpu_custom_call.1} parent=1 // pred_fallthru
      _
    // Predicated region
    $region6: #{tpu_custom_call.1} parent=1 // pred_check
      _
    $region7: #{tpu_custom_call.1} parent=1 // pred_check_branch
      %18 = sbr.rel (0) target = $region9
    $region8: #{tpu_custom_call.1} parent=1 // pred_region
      %20 = vsyncadd [#allocation4], 0
      %s21 = sshll.u32 %s1, 4
      %s22 = int_to_ptr.hbm [resolvable:$true] %s21
      %s23 = sshll.u32 [#allocation3], 4
      %s24 = int_to_ptr.vmem [resolvable:$true] %s23
      %29 = dma.hbm_to_vmem [thread:$0]  %s22, 512, %s24, [#allocation4], 128, 128, 8
    $region9: #{tpu_custom_call.1} parent=1 // pred_fallthru
      _
    // Predicated region
    $region10: #{tpu_custom_call.1} parent=1 // pred_check
      _
    $region11: #{tpu_custom_call.1} parent=1 // pred_check_branch
      %31 = sbr.rel (0) target = $region13
    $region12: #{tpu_custom_call.1} parent=1 // pred_region
      %33 = vsyncadd [#allocation7], 0
      %s34 = sshll.u32 %s2, 4
      %s35 = int_to_ptr.hbm [resolvable:$true] %s34
      %s36 = sshll.u32 [#allocation6], 4
      %s37 = int_to_ptr.vmem [resolvable:$true] %s36
      %42 = dma.hbm_to_vmem [thread:$0]  %s35, 512, %s37, [#allocation7], 128, 128, 8
    $region13: #{tpu_custom_call.1} parent=1 // pred_fallthru
      _
    // Predicated region
    $region14: #{tpu_custom_call.1} parent=1 // pred_check
      _
    $region15: #{tpu_custom_call.1} parent=1 // pred_check_branch
      %44 = sbr.rel (0) target = $region17
    $region16: #{tpu_custom_call.1} parent=1 // pred_region
      %46 = vsyncadd [#allocation7], 0
      %s47 = sshll.u32 %s3, 4
      %s48 = int_to_ptr.hbm [resolvable:$true] %s47
      %s49 = sshll.u32 [#allocation8], 4
      %s50 = int_to_ptr.vmem [resolvable:$true] %s49
      %55 = dma.hbm_to_vmem [thread:$0]  %s48, 512, %s50, [#allocation7], 128, 128, 8
    $region17: #{tpu_custom_call.1} parent=1 // pred_fallthru
      _
    // Predicated region
    $region18: #{tpu_custom_call.1} parent=1 // pred_check
      _
    $region19: #{tpu_custom_call.1} parent=1 // pred_check_branch
      %57 = sbr.rel (0) target = $region21
    $region20: #{tpu_custom_call.1} parent=1 // pred_region
      _
    $region21: #{tpu_custom_call.1} parent=1 // pred_fallthru
      _
    // Predicated region
    $region22: #{tpu_custom_call.1} parent=1 // pred_check
      _
    $region23: #{tpu_custom_call.1} parent=1 // pred_check_branch
      %59 = sbr.rel (0) target = $region25
    $region24: #{tpu_custom_call.1} parent=1 // pred_region
      _
    $region25: #{tpu_custom_call.1} parent=1 // pred_fallthru
      _
    // Predicated region
    $region26: #{tpu_custom_call.1} parent=1 // pred_check
      _
    $region27: #{tpu_custom_call.1} parent=1 // pred_check_branch
      %61 = sbr.rel (0) target = $region29
    $region28: #{tpu_custom_call.1} parent=1 // pred_region
      _
    $region29: #{tpu_custom_call.1} parent=1 // pred_fallthru
      _
    // Predicated region
    $region30: #{tpu_custom_call.1} parent=1 // pred_check
      _
    $region31: #{tpu_custom_call.1} parent=1 // pred_check_branch
      %63 = sbr.rel (0) target = $region33
    $region32: #{tpu_custom_call.1} parent=1 // pred_region
      %65 = dma.done [#allocation4], 512
    $region33: #{tpu_custom_call.1} parent=1 // pred_fallthru
      _
    // Predicated region
    $region34: #{tpu_custom_call.1} parent=1 // pred_check
      _
    $region35: #{tpu_custom_call.1} parent=1 // pred_check_branch
      %67 = sbr.rel (0) target = $region37
    $region36: #{tpu_custom_call.1} parent=1 // pred_region
      %69 = dma.done [#allocation7], 512
    $region37: #{tpu_custom_call.1} parent=1 // pred_fallthru
      _
    // Predicated region
    $region38: #{tpu_custom_call.1} parent=1 // pred_check
      _
    $region39: #{tpu_custom_call.1} parent=1 // pred_check_branch
      %71 = sbr.rel (0) target = $region41
    $region40: #{tpu_custom_call.1} parent=1 // pred_region
      %73 = dma.done [#allocation7], 512
    $region41: #{tpu_custom_call.1} parent=1 // pred_fallthru
      _
    %v74 = vld [vmem:[#allocation3] sm:$0xff]
    %v75 = vld [vmem:[#allocation3 + $0x8] sm:$0xff]
    %v76 = vld [vmem:[#allocation3 + $0x10] sm:$0xff]
    %v77 = vld [vmem:[#allocation3 + $0x18] sm:$0xff]
    %v78 = vld [vmem:[%s0] sm:$0xf]
    %vm79 = vcmask 261120
    %v81 = vsel %vm79, 0.0, 0
    %83 = vmatpush.msra.mxu0 0.0
    %84 = vmatpush.msra.mxu0 0.0
    %85 = vmatpush.msra.mxu0 0.0
    %86 = vmatpush.msra.mxu0 0.0
    %87 = vmatpush.msra.mxu0 0.0
    %88 = vmatpush.msra.mxu0 0.0
    %89 = vmatpush.msra.mxu0 0.0
    %90 = vmatpush.msra.mxu0 0.0
    %91 = vmatpush.msra.mxu0 0.0
    %92 = vmatpush.msra.mxu0 0.0
    %93 = vmatpush.msra.mxu0 0.0
    %94 = vmatpush.msra.mxu0 0.0
    %95 = vmatpush.msra.mxu0 %v77
    %96 = vmatpush.msra.mxu0 %v76
    %97 = vmatpush.msra.mxu0 %v75
    %98 = vmatpush.msra.mxu0 %v74
    %99 = vmatmul.f32.gmra.mxu0 %v81
    %v100 = vpop.f32.mrf.mxu0
    %v101 = vadd.f32 0.0, %v100
    %102 = vdwg.mxu0
    %v103 = vadd.f32 %v78, %v101
    %v104 = vtanh.pop %v103
    %vm105 = vcmask 257024
    %106 = vst.msk [vmem:[#allocation2] sm:$0xf] %vm105, %v104
    %s107 = scalar_lea.vmem %s0, 4
    %v108 = vld [vmem:[%s107] sm:$0xf]
    %v110 = vsel %vm79, %v104, 0
    %112 = vmatpush.msra.mxu0 0.0
    %113 = vmatpush.msra.mxu0 0.0
    %114 = vmatpush.msra.mxu0 0.0
    %115 = vmatpush.msra.mxu0 0.0
    %116 = vmatpush.msra.mxu0 0.0
    %117 = vmatpush.msra.mxu0 0.0
    %118 = vmatpush.msra.mxu0 0.0
    %119 = vmatpush.msra.mxu0 0.0
    %120 = vmatpush.msra.mxu0 0.0
    %121 = vmatpush.msra.mxu0 0.0
    %122 = vmatpush.msra.mxu0 0.0
    %123 = vmatpush.msra.mxu0 0.0
    %124 = vmatpush.msra.mxu0 %v77
    %125 = vmatpush.msra.mxu0 %v76
    %126 = vmatpush.msra.mxu0 %v75
    %127 = vmatpush.msra.mxu0 %v74
    %128 = vmatmul.f32.gmra.mxu0 %v110
    %v129 = vpop.f32.mrf.mxu0
    %v130 = vadd.f32 0.0, %v129
    %131 = vdwg.mxu0
    %v132 = vadd.f32 %v108, %v130
    %v133 = vtanh.pop %v132
    %s134 = scalar_lea.vmem [#allocation2], 4
    %135 = vst.msk [vmem:[%s134] sm:$0xf] %vm105, %v133
    %s136 = scalar_lea.vmem %s0, 8
    %v137 = vld [vmem:[%s136] sm:$0xf]
    %v139 = vsel %vm79, %v133, 0
    %141 = vmatpush.msra.mxu0 0.0
    %142 = vmatpush.msra.mxu0 0.0
    %143 = vmatpush.msra.mxu0 0.0
    %144 = vmatpush.msra.mxu0 0.0
    %145 = vmatpush.msra.mxu0 0.0
    %146 = vmatpush.msra.mxu0 0.0
    %147 = vmatpush.msra.mxu0 0.0
    %148 = vmatpush.msra.mxu0 0.0
    %149 = vmatpush.msra.mxu0 0.0
    %150 = vmatpush.msra.mxu0 0.0
    %151 = vmatpush.msra.mxu0 0.0
    %152 = vmatpush.msra.mxu0 0.0
    %153 = vmatpush.msra.mxu0 %v77
    %154 = vmatpush.msra.mxu0 %v76
    %155 = vmatpush.msra.mxu0 %v75
    %156 = vmatpush.msra.mxu0 %v74
    %157 = vmatmul.f32.gmra.mxu0 %v139
    %v158 = vpop.f32.mrf.mxu0
    %v159 = vadd.f32 0.0, %v158
    %160 = vdwg.mxu0
    %v161 = vadd.f32 %v137, %v159
    %v162 = vtanh.pop %v161
    %s163 = scalar_lea.vmem [#allocation2], 8
    %164 = vst.msk [vmem:[%s163] sm:$0xf] %vm105, %v162
    %s165 = scalar_lea.vmem %s0, 12
    %v166 = vld [vmem:[%s165] sm:$0xf]
    %v168 = vsel %vm79, %v162, 0
    %170 = vmatpush.msra.mxu0 0.0
    %171 = vmatpush.msra.mxu0 0.0
    %172 = vmatpush.msra.mxu0 0.0
    %173 = vmatpush.msra.mxu0 0.0
    %174 = vmatpush.msra.mxu0 0.0
    %175 = vmatpush.msra.mxu0 0.0
    %176 = vmatpush.msra.mxu0 0.0
    %177 = vmatpush.msra.mxu0 0.0
    %178 = vmatpush.msra.mxu0 0.0
    %179 = vmatpush.msra.mxu0 0.0
    %180 = vmatpush.msra.mxu0 0.0
    %181 = vmatpush.msra.mxu0 0.0
    %182 = vmatpush.msra.mxu0 %v77
    %183 = vmatpush.msra.mxu0 %v76
    %184 = vmatpush.msra.mxu0 %v75
    %185 = vmatpush.msra.mxu0 %v74
    %186 = vmatmul.f32.gmra.mxu0 %v168
    %v187 = vpop.f32.mrf.mxu0
    %v188 = vadd.f32 0.0, %v187
    %189 = vdwg.mxu0
    %v190 = vadd.f32 %v166, %v188
    %v191 = vtanh.pop %v190
    %s192 = scalar_lea.vmem [#allocation2], 12
    %193 = vst.msk [vmem:[%s192] sm:$0xf] %vm105, %v191
    %s194 = scalar_lea.vmem %s0, 16
    %v195 = vld [vmem:[%s194] sm:$0xf]
    %v197 = vsel %vm79, %v191, 0
    %199 = vmatpush.msra.mxu0 0.0
    %200 = vmatpush.msra.mxu0 0.0
    %201 = vmatpush.msra.mxu0 0.0
    %202 = vmatpush.msra.mxu0 0.0
    %203 = vmatpush.msra.mxu0 0.0
    %204 = vmatpush.msra.mxu0 0.0
    %205 = vmatpush.msra.mxu0 0.0
    %206 = vmatpush.msra.mxu0 0.0
    %207 = vmatpush.msra.mxu0 0.0
    %208 = vmatpush.msra.mxu0 0.0
    %209 = vmatpush.msra.mxu0 0.0
    %210 = vmatpush.msra.mxu0 0.0
    %211 = vmatpush.msra.mxu0 %v77
    %212 = vmatpush.msra.mxu0 %v76
    %213 = vmatpush.msra.mxu0 %v75
    %214 = vmatpush.msra.mxu0 %v74
    %215 = vmatmul.f32.gmra.mxu0 %v197
    %v216 = vpop.f32.mrf.mxu0
    %v217 = vadd.f32 0.0, %v216
    %218 = vdwg.mxu0
    %v219 = vadd.f32 %v195, %v217
    %v220 = vtanh.pop %v219
    %s221 = scalar_lea.vmem [#allocation2], 16
    %222 = vst.msk [vmem:[%s221] sm:$0xf] %vm105, %v220
    %s223 = scalar_lea.vmem %s0, 20
    %v224 = vld [vmem:[%s223] sm:$0xf]
    %v226 = vsel %vm79, %v220, 0
    %228 = vmatpush.msra.mxu0 0.0
    %229 = vmatpush.msra.mxu0 0.0
    %230 = vmatpush.msra.mxu0 0.0
    %231 = vmatpush.msra.mxu0 0.0
    %232 = vmatpush.msra.mxu0 0.0
    %233 = vmatpush.msra.mxu0 0.0
    %234 = vmatpush.msra.mxu0 0.0
    %235 = vmatpush.msra.mxu0 0.0
    %236 = vmatpush.msra.mxu0 0.0
    %237 = vmatpush.msra.mxu0 0.0
    %238 = vmatpush.msra.mxu0 0.0
    %239 = vmatpush.msra.mxu0 0.0
    %240 = vmatpush.msra.mxu0 %v77
    %241 = vmatpush.msra.mxu0 %v76
    %242 = vmatpush.msra.mxu0 %v75
    %243 = vmatpush.msra.mxu0 %v74
    %244 = vmatmul.f32.gmra.mxu0 %v226
    %v245 = vpop.f32.mrf.mxu0
    %v246 = vadd.f32 0.0, %v245
    %247 = vdwg.mxu0
    %v248 = vadd.f32 %v224, %v246
    %v249 = vtanh.pop %v248
    %s250 = scalar_lea.vmem [#allocation2], 20
    %251 = vst.msk [vmem:[%s250] sm:$0xf] %vm105, %v249
    %s252 = scalar_lea.vmem %s0, 24
    %v253 = vld [vmem:[%s252] sm:$0xf]
    %v255 = vsel %vm79, %v249, 0
    %257 = vmatpush.msra.mxu0 0.0
    %258 = vmatpush.msra.mxu0 0.0
    %259 = vmatpush.msra.mxu0 0.0
    %260 = vmatpush.msra.mxu0 0.0
    %261 = vmatpush.msra.mxu0 0.0
    %262 = vmatpush.msra.mxu0 0.0
    %263 = vmatpush.msra.mxu0 0.0
    %264 = vmatpush.msra.mxu0 0.0
    %265 = vmatpush.msra.mxu0 0.0
    %266 = vmatpush.msra.mxu0 0.0
    %267 = vmatpush.msra.mxu0 0.0
    %268 = vmatpush.msra.mxu0 0.0
    %269 = vmatpush.msra.mxu0 %v77
    %270 = vmatpush.msra.mxu0 %v76
    %271 = vmatpush.msra.mxu0 %v75
    %272 = vmatpush.msra.mxu0 %v74
    %273 = vmatmul.f32.gmra.mxu0 %v255
    %v274 = vpop.f32.mrf.mxu0
    %v275 = vadd.f32 0.0, %v274
    %276 = vdwg.mxu0
    %v277 = vadd.f32 %v253, %v275
    %v278 = vtanh.pop %v277
    %s279 = scalar_lea.vmem [#allocation2], 24
    %280 = vst.msk [vmem:[%s279] sm:$0xf] %vm105, %v278
    %s281 = scalar_lea.vmem %s0, 28
    %v282 = vld [vmem:[%s281] sm:$0xf]
    %v284 = vsel %vm79, %v278, 0
    %286 = vmatpush.msra.mxu0 0.0
    %287 = vmatpush.msra.mxu0 0.0
    %288 = vmatpush.msra.mxu0 0.0
    %289 = vmatpush.msra.mxu0 0.0
    %290 = vmatpush.msra.mxu0 0.0
    %291 = vmatpush.msra.mxu0 0.0
    %292 = vmatpush.msra.mxu0 0.0
    %293 = vmatpush.msra.mxu0 0.0
    %294 = vmatpush.msra.mxu0 0.0
    %295 = vmatpush.msra.mxu0 0.0
    %296 = vmatpush.msra.mxu0 0.0
    %297 = vmatpush.msra.mxu0 0.0
    %298 = vmatpush.msra.mxu0 %v77
    %299 = vmatpush.msra.mxu0 %v76
    %300 = vmatpush.msra.mxu0 %v75
    %301 = vmatpush.msra.mxu0 %v74
    %302 = vmatmul.f32.gmra.mxu0 %v284
    %v303 = vpop.f32.mrf.mxu0
    %v304 = vadd.f32 0.0, %v303
    %305 = vdwg.mxu0
    %v306 = vadd.f32 %v282, %v304
    %v307 = vtanh.pop %v306
    %s308 = scalar_lea.vmem [#allocation2], 28
    %309 = vst.msk [vmem:[%s308] sm:$0xf] %vm105, %v307
    %v310 = vld [vmem:[#allocation6] sm:$0xff]
    %v311 = vld [vmem:[#allocation6 + $0x8] sm:$0xff]
    %v312 = vld [vmem:[#allocation6 + $0x10] sm:$0xff]
    %v313 = vld [vmem:[#allocation6 + $0x18] sm:$0xff]
    %v314 = vld [vmem:[#allocation8] sm:$0xff]
    %v315 = vld [vmem:[#allocation8 + $0x8] sm:$0xff]
    %v316 = vld [vmem:[#allocation8 + $0x10] sm:$0xff]
    %v317 = vld [vmem:[#allocation8 + $0x18] sm:$0xff]
    %v318 = vld [vmem:[%s4] sm:$0x1]
    %v319 = vld [vmem:[#allocation2] sm:$0xf]
    %v320 = vld [vmem:[#allocation2 + $0x4] sm:$0xf]
    %v321 = vld [vmem:[#allocation2 + $0x8] sm:$0xf]
    %v322 = vld [vmem:[#allocation2 + $0xc] sm:$0xf]
    %v323 = vld [vmem:[#allocation2 + $0x10] sm:$0xf]
    %v324 = vld [vmem:[#allocation2 + $0x14] sm:$0xf]
    %v325 = vld [vmem:[#allocation2 + $0x18] sm:$0xf]
    %v326 = vld [vmem:[#allocation2 + $0x1c] sm:$0xf]
    %v328 = vperm.slane %v318, 0
    %338 = vst [vmem:[#allocation1] ss:$2 sm:$0xff] %v319
    %s339 = scalar_lea.vmem [#allocation1], 1
    %340 = vst [vmem:[%s339] ss:$2 sm:$0xff] %v320
    %s341 = scalar_lea.vmem [#allocation1], 16
    %342 = vst [vmem:[%s341] ss:$2 sm:$0xff] %v321
    %s343 = scalar_lea.vmem [#allocation1], 17
    %344 = vst [vmem:[%s343] ss:$2 sm:$0xff] %v322
    %s345 = scalar_lea.vmem [#allocation1], 32
    %346 = vst [vmem:[%s345] ss:$2 sm:$0xff] %v323
    %s347 = scalar_lea.vmem [#allocation1], 33
    %348 = vst [vmem:[%s347] ss:$2 sm:$0xff] %v324
    %s349 = scalar_lea.vmem [#allocation1], 48
    %350 = vst [vmem:[%s349] ss:$2 sm:$0xff] %v325
    %s351 = scalar_lea.vmem [#allocation1], 49
    %352 = vst [vmem:[%s351] ss:$2 sm:$0xff] %v326
    %v353 = vld.sshfl [vmem:[#allocation1] sm:$0xff pattern:$0x75316420]
    %v354 = vld.sshfl [vmem:[#allocation1 + $0x10] sm:$0xff pattern:$0x75316420]
    %v355 = vld.sshfl [vmem:[#allocation1 + $0x20] sm:$0xff pattern:$0x75316420]
    %v356 = vld.sshfl [vmem:[#allocation1 + $0x30] sm:$0xff pattern:$0x75316420]
    %v357 = vsel %vm79, %v353, 0
    %v359 = vsel %vm79, %v354, 0
    %v361 = vsel %vm79, %v355, 0
    %v363 = vsel %vm79, %v356, 0
    %365 = vmatpush.msra.mxu0 0.0
    %366 = vmatpush.msra.mxu0 0.0
    %367 = vmatpush.msra.mxu0 0.0
    %368 = vmatpush.msra.mxu0 0.0
    %369 = vmatpush.msra.mxu0 0.0
    %370 = vmatpush.msra.mxu0 0.0
    %371 = vmatpush.msra.mxu0 0.0
    %372 = vmatpush.msra.mxu0 0.0
    %373 = vmatpush.msra.mxu0 0.0
    %374 = vmatpush.msra.mxu0 0.0
    %375 = vmatpush.msra.mxu0 0.0
    %376 = vmatpush.msra.mxu0 0.0
    %377 = vmatpush.msra.mxu0 %v313
    %378 = vmatpush.msra.mxu0 %v312
    %379 = vmatpush.msra.mxu0 %v311
    %380 = vmatpush.msra.mxu0 %v310
    %381 = vmatmul.f32.gmra.mxu0 %v357
    %v382 = vpop.f32.mrf.mxu0
    %v383 = vadd.f32 %v328, %v382
    %384 = vmatmul.f32.gmra.mxu0 %v359
    %v385 = vpop.f32.mrf.mxu0
    %v386 = vadd.f32 %v328, %v385
    %387 = vmatmul.f32.gmra.mxu0 %v361
    %v388 = vpop.f32.mrf.mxu0
    %v389 = vadd.f32 %v328, %v388
    %390 = vmatmul.f32.gmra.mxu0 %v363
    %v391 = vpop.f32.mrf.mxu0
    %v392 = vadd.f32 %v328, %v391
    %393 = vdwg.mxu0
    %v398 = vrot.slane %v383, 4
    %v399 = vrot.slane %v386, 4
    %v400 = vrot.slane %v389, 4
    %v401 = vrot.slane %v392, 4
    %406 = vst.msk [vmem:[#allocation2] sm:$0xf] %vm105, %v383
    %407 = vst.msk [vmem:[#allocation2 + $0x4] sm:$0xf] %vm105, %v398
    %408 = vst.msk [vmem:[#allocation2 + $0x8] sm:$0xf] %vm105, %v386
    %409 = vst.msk [vmem:[#allocation2 + $0xc] sm:$0xf] %vm105, %v399
    %410 = vst.msk [vmem:[#allocation2 + $0x10] sm:$0xf] %vm105, %v389
    %411 = vst.msk [vmem:[#allocation2 + $0x14] sm:$0xf] %vm105, %v400
    %412 = vst.msk [vmem:[#allocation2 + $0x18] sm:$0xf] %vm105, %v392
    %413 = vst.msk [vmem:[#allocation2 + $0x1c] sm:$0xf] %vm105, %v401
    %v414 = vld [vmem:[#allocation2] sm:$0xf]
    %415 = vmatpush.msra.mxu0 0.0
    %416 = vmatpush.msra.mxu0 0.0
    %417 = vmatpush.msra.mxu0 0.0
    %418 = vmatpush.msra.mxu0 0.0
    %419 = vmatpush.msra.mxu0 0.0
    %420 = vmatpush.msra.mxu0 0.0
    %421 = vmatpush.msra.mxu0 0.0
    %422 = vmatpush.msra.mxu0 0.0
    %423 = vmatpush.msra.mxu0 0.0
    %424 = vmatpush.msra.mxu0 0.0
    %425 = vmatpush.msra.mxu0 0.0
    %426 = vmatpush.msra.mxu0 0.0
    %427 = vmatpush.msra.mxu0 %v317
    %428 = vmatpush.msra.mxu0 %v316
    %429 = vmatpush.msra.mxu0 %v315
    %430 = vmatpush.msra.mxu0 %v314
    %431 = vmatmul.f32.gmra.mxu0 %v81
    %v432 = vpop.f32.mrf.mxu0
    %v433 = vadd.f32 0.0, %v432
    %434 = vdwg.mxu0
    %v435 = vadd.f32 %v414, %v433
    %v436 = vtanh.pop %v435
    %v437 = vld [vmem:[%s134] sm:$0xf]
    %v439 = vsel %vm79, %v436, 0
    %441 = vmatpush.msra.mxu0 0.0
    %442 = vmatpush.msra.mxu0 0.0
    %443 = vmatpush.msra.mxu0 0.0
    %444 = vmatpush.msra.mxu0 0.0
    %445 = vmatpush.msra.mxu0 0.0
    %446 = vmatpush.msra.mxu0 0.0
    %447 = vmatpush.msra.mxu0 0.0
    %448 = vmatpush.msra.mxu0 0.0
    %449 = vmatpush.msra.mxu0 0.0
    %450 = vmatpush.msra.mxu0 0.0
    %451 = vmatpush.msra.mxu0 0.0
    %452 = vmatpush.msra.mxu0 0.0
    %453 = vmatpush.msra.mxu0 %v317
    %454 = vmatpush.msra.mxu0 %v316
    %455 = vmatpush.msra.mxu0 %v315
    %456 = vmatpush.msra.mxu0 %v314
    %457 = vmatmul.f32.gmra.mxu0 %v439
    %v458 = vpop.f32.mrf.mxu0
    %v459 = vadd.f32 0.0, %v458
    %460 = vdwg.mxu0
    %v461 = vadd.f32 %v437, %v459
    %v462 = vtanh.pop %v461
    %v463 = vld [vmem:[%s163] sm:$0xf]
    %v465 = vsel %vm79, %v462, 0
    %467 = vmatpush.msra.mxu0 0.0
    %468 = vmatpush.msra.mxu0 0.0
    %469 = vmatpush.msra.mxu0 0.0
    %470 = vmatpush.msra.mxu0 0.0
    %471 = vmatpush.msra.mxu0 0.0
    %472 = vmatpush.msra.mxu0 0.0
    %473 = vmatpush.msra.mxu0 0.0
    %474 = vmatpush.msra.mxu0 0.0
    %475 = vmatpush.msra.mxu0 0.0
    %476 = vmatpush.msra.mxu0 0.0
    %477 = vmatpush.msra.mxu0 0.0
    %478 = vmatpush.msra.mxu0 0.0
    %479 = vmatpush.msra.mxu0 %v317
    %480 = vmatpush.msra.mxu0 %v316
    %481 = vmatpush.msra.mxu0 %v315
    %482 = vmatpush.msra.mxu0 %v314
    %483 = vmatmul.f32.gmra.mxu0 %v465
    %v484 = vpop.f32.mrf.mxu0
    %v485 = vadd.f32 0.0, %v484
    %486 = vdwg.mxu0
    %v487 = vadd.f32 %v463, %v485
    %v488 = vtanh.pop %v487
    %v489 = vld [vmem:[%s192] sm:$0xf]
    %v491 = vsel %vm79, %v488, 0
    %493 = vmatpush.msra.mxu0 0.0
    %494 = vmatpush.msra.mxu0 0.0
    %495 = vmatpush.msra.mxu0 0.0
    %496 = vmatpush.msra.mxu0 0.0
    %497 = vmatpush.msra.mxu0 0.0
    %498 = vmatpush.msra.mxu0 0.0
    %499 = vmatpush.msra.mxu0 0.0
    %500 = vmatpush.msra.mxu0 0.0
    %501 = vmatpush.msra.mxu0 0.0
    %502 = vmatpush.msra.mxu0 0.0
    %503 = vmatpush.msra.mxu0 0.0
    %504 = vmatpush.msra.mxu0 0.0
    %505 = vmatpush.msra.mxu0 %v317
    %506 = vmatpush.msra.mxu0 %v316
    %507 = vmatpush.msra.mxu0 %v315
    %508 = vmatpush.msra.mxu0 %v314
    %509 = vmatmul.f32.gmra.mxu0 %v491
    %v510 = vpop.f32.mrf.mxu0
    %v511 = vadd.f32 0.0, %v510
    %512 = vdwg.mxu0
    %v513 = vadd.f32 %v489, %v511
    %v514 = vtanh.pop %v513
    %v515 = vld [vmem:[%s221] sm:$0xf]
    %v517 = vsel %vm79, %v514, 0
    %519 = vmatpush.msra.mxu0 0.0
    %520 = vmatpush.msra.mxu0 0.0
    %521 = vmatpush.msra.mxu0 0.0
    %522 = vmatpush.msra.mxu0 0.0
    %523 = vmatpush.msra.mxu0 0.0
    %524 = vmatpush.msra.mxu0 0.0
    %525 = vmatpush.msra.mxu0 0.0
    %526 = vmatpush.msra.mxu0 0.0
    %527 = vmatpush.msra.mxu0 0.0
    %528 = vmatpush.msra.mxu0 0.0
    %529 = vmatpush.msra.mxu0 0.0
    %530 = vmatpush.msra.mxu0 0.0
    %531 = vmatpush.msra.mxu0 %v317
    %532 = vmatpush.msra.mxu0 %v316
    %533 = vmatpush.msra.mxu0 %v315
    %534 = vmatpush.msra.mxu0 %v314
    %535 = vmatmul.f32.gmra.mxu0 %v517
    %v536 = vpop.f32.mrf.mxu0
    %v537 = vadd.f32 0.0, %v536
    %538 = vdwg.mxu0
    %v539 = vadd.f32 %v515, %v537
    %v540 = vtanh.pop %v539
    %v541 = vld [vmem:[%s250] sm:$0xf]
    %v543 = vsel %vm79, %v540, 0
    %545 = vmatpush.msra.mxu0 0.0
    %546 = vmatpush.msra.mxu0 0.0
    %547 = vmatpush.msra.mxu0 0.0
    %548 = vmatpush.msra.mxu0 0.0
    %549 = vmatpush.msra.mxu0 0.0
    %550 = vmatpush.msra.mxu0 0.0
    %551 = vmatpush.msra.mxu0 0.0
    %552 = vmatpush.msra.mxu0 0.0
    %553 = vmatpush.msra.mxu0 0.0
    %554 = vmatpush.msra.mxu0 0.0
    %555 = vmatpush.msra.mxu0 0.0
    %556 = vmatpush.msra.mxu0 0.0
    %557 = vmatpush.msra.mxu0 %v317
    %558 = vmatpush.msra.mxu0 %v316
    %559 = vmatpush.msra.mxu0 %v315
    %560 = vmatpush.msra.mxu0 %v314
    %561 = vmatmul.f32.gmra.mxu0 %v543
    %v562 = vpop.f32.mrf.mxu0
    %v563 = vadd.f32 0.0, %v562
    %564 = vdwg.mxu0
    %v565 = vadd.f32 %v541, %v563
    %v566 = vtanh.pop %v565
    %v567 = vld [vmem:[%s279] sm:$0xf]
    %v569 = vsel %vm79, %v566, 0
    %571 = vmatpush.msra.mxu0 0.0
    %572 = vmatpush.msra.mxu0 0.0
    %573 = vmatpush.msra.mxu0 0.0
    %574 = vmatpush.msra.mxu0 0.0
    %575 = vmatpush.msra.mxu0 0.0
    %576 = vmatpush.msra.mxu0 0.0
    %577 = vmatpush.msra.mxu0 0.0
    %578 = vmatpush.msra.mxu0 0.0
    %579 = vmatpush.msra.mxu0 0.0
    %580 = vmatpush.msra.mxu0 0.0
    %581 = vmatpush.msra.mxu0 0.0
    %582 = vmatpush.msra.mxu0 0.0
    %583 = vmatpush.msra.mxu0 %v317
    %584 = vmatpush.msra.mxu0 %v316
    %585 = vmatpush.msra.mxu0 %v315
    %586 = vmatpush.msra.mxu0 %v314
    %587 = vmatmul.f32.gmra.mxu0 %v569
    %v588 = vpop.f32.mrf.mxu0
    %v589 = vadd.f32 0.0, %v588
    %590 = vdwg.mxu0
    %v591 = vadd.f32 %v567, %v589
    %v592 = vtanh.pop %v591
    %v593 = vld [vmem:[%s308] sm:$0xf]
    %v595 = vsel %vm79, %v592, 0
    %597 = vmatpush.msra.mxu0 0.0
    %598 = vmatpush.msra.mxu0 0.0
    %599 = vmatpush.msra.mxu0 0.0
    %600 = vmatpush.msra.mxu0 0.0
    %601 = vmatpush.msra.mxu0 0.0
    %602 = vmatpush.msra.mxu0 0.0
    %603 = vmatpush.msra.mxu0 0.0
    %604 = vmatpush.msra.mxu0 0.0
    %605 = vmatpush.msra.mxu0 0.0
    %606 = vmatpush.msra.mxu0 0.0
    %607 = vmatpush.msra.mxu0 0.0
    %608 = vmatpush.msra.mxu0 0.0
    %609 = vmatpush.msra.mxu0 %v317
    %610 = vmatpush.msra.mxu0 %v316
    %611 = vmatpush.msra.mxu0 %v315
    %612 = vmatpush.msra.mxu0 %v314
    %613 = vmatmul.f32.gmra.mxu0 %v595
    %v614 = vpop.f32.mrf.mxu0
    %v615 = vadd.f32 0.0, %v614
    %616 = vdwg.mxu0
    %v617 = vadd.f32 %v593, %v615
    %v618 = vtanh.pop %v617
    %v619 = vld [vmem:[%s5] sm:$0xff]
    %v620 = vld [vmem:[%s5 + $0x8] sm:$0xff]
    %v621 = vld [vmem:[%s5 + $0x10] sm:$0xff]
    %v622 = vld [vmem:[%s5 + $0x18] sm:$0xff]
    %v623 = vld [vmem:[%s6] sm:$0x1]
    %v625 = vperm.slane %v623, 0
    %v628 = vsel %vm79, %v618, 0
    %630 = vmatpush.msra.mxu0 0.0
    %631 = vmatpush.msra.mxu0 0.0
    %632 = vmatpush.msra.mxu0 0.0
    %633 = vmatpush.msra.mxu0 0.0
    %634 = vmatpush.msra.mxu0 0.0
    %635 = vmatpush.msra.mxu0 0.0
    %636 = vmatpush.msra.mxu0 0.0
    %637 = vmatpush.msra.mxu0 0.0
    %638 = vmatpush.msra.mxu0 0.0
    %639 = vmatpush.msra.mxu0 0.0
    %640 = vmatpush.msra.mxu0 0.0
    %641 = vmatpush.msra.mxu0 0.0
    %642 = vmatpush.msra.mxu0 %v622
    %643 = vmatpush.msra.mxu0 %v621
    %644 = vmatpush.msra.mxu0 %v620
    %645 = vmatpush.msra.mxu0 %v619
    %646 = vmatmul.f32.gmra.mxu0 %v628
    %v647 = vpop.f32.mrf.mxu0
    %v648 = vadd.f32 %v625, %v647
    %649 = vdwg.mxu0
    %vm650 = vcmask 35840
    %651 = vst.msk [vmem:[#allocation9] sm:$0xf] %vm650, %v648
    // Predicated region
    $region42: #{tpu_custom_call.1} parent=1 // pred_check
      _
    $region43: #{tpu_custom_call.1} parent=1 // pred_check_branch
      %653 = sbr.rel (0) target = $region45
    $region44: #{tpu_custom_call.1} parent=1 // pred_region
      %655 = vsyncadd [#allocation5], 0
      %s657 = sshll.u32 [#allocation9], 4
      %s658 = int_to_ptr.vmem [resolvable:$true] %s657
      %s659 = sshll.u32 %s7, 4
      %s660 = int_to_ptr.hbm [resolvable:$true] %s659
      %662 = dma.vmem_to_hbm [thread:$0]  %s658, 64, %s660, [#allocation5]
    $region45: #{tpu_custom_call.1} parent=1 // pred_fallthru
      _
    // Predicated region
    $region46: #{tpu_custom_call.1} parent=1 // pred_check
      _
    $region47: #{tpu_custom_call.1} parent=1 // pred_check_branch
      %664 = sbr.rel (0) target = $region49
    $region48: #{tpu_custom_call.1} parent=1 // pred_region
      %666 = dma.done [#allocation5], 64
    $region49: #{tpu_custom_call.1} parent=1 // pred_fallthru
      _
    %667 = vsyncpa [#allocation4], 1
    %668 = vsyncpa [#allocation7], 1
    %669 = vsyncpa [#allocation5], 1

</llo_original>
